<compile_context>
chip_gen: v6e
topology: v6e:2x2x1
jax: 0.10.0
libtpu: 0.0.40
codegen_flags: <defaults>
</compile_context>

<pallas_src>
import functools
import math

import jax
import jax.numpy as jnp
from jax.experimental import pallas as pl
from jax.experimental.pallas import tpu as pltpu

SIGMA = 0.02
LOG_CONST = math.log(SIGMA) + 0.5 * math.log(2.0 * math.pi)
LANE = 128      # TPU lane width; attribute axis padded to a multiple of this
SUBLANE = 8


def _generator_lts_kernel(consts_ref, eps_ref, attr_ref, psum_ref, *, n_valid):
    # Constant slab rows (all (1, n_pad) f32):
    #   0: min_i   1: (max_i - min_i)   2: means (normalized, padded)   3: 0/1 mask
    mins = consts_ref[0:1, :]
    rng = consts_ref[1:2, :]
    means = consts_ref[2:3, :]
    mask = consts_ref[3:4, :]

    eps = eps_ref[...]                              # (K, n_pad) standard-normal draws

    # Reparameterized sample: out = mean + sigma * eps   (broadcast means over K rows)
    out = means + SIGMA * eps

    # sample_attributes = clip(out, 0, 1) * (max - min) + min
    # Padded lanes: rng == 0 and mins == 0  ->  attr == 0 there.
    attr_ref[...] = jnp.clip(out, 0.0, 1.0) * rng + mins

    # prob_sum_k = sum_i [ -0.5*eps^2 - log(sigma) - 0.5*log(2*pi) ]  over valid lanes.
    # The constant term is folded at trace time; padding lanes are masked out of
    # the quadratic term by the precomputed 0/1 row (no iota / compare / select).
    psum_ref[...] = (-0.5 * jnp.sum((eps * eps) * mask, axis=1, keepdims=True)
                     - float(n_valid) * LOG_CONST)


class GeneratorLTS:
    """Pallas/JAX port of the PyTorch Generator_lts module (forward only)."""

    def __init__(self, mins, maxs, attribute_list, batch=64):
        mins = jnp.asarray(mins, jnp.float32)
        maxs = jnp.asarray(maxs, jnp.float32)
        attribute_list = jnp.asarray(attribute_list, jnp.float32)

        n = int(mins.shape[0])
        n_pad = LANE * max(1, -(-n // LANE))        # round up to multiple of 128
        k = SUBLANE * max(1, -(-int(batch) // SUBLANE))  # batch rounded to multiple of 8
        self.n = n
        self.n_pad = n_pad
        self.batch = k
        self.mins = mins
        self.maxs = maxs

        # Trainable parameter of the torch module (normalized attributes).
        means_norm = (attribute_list - mins) / (maxs - mins)

        # Single (8, n_pad) constant slab -> exactly one constant-input DMA.
        consts = jnp.zeros((SUBLANE, n_pad), jnp.float32)
        consts = consts.at[0, :n].set(mins)
        consts = consts.at[1, :n].set(maxs - mins)
        consts = consts.at[2, :n].set(means_norm)
        consts = consts.at[3, :n].set(jnp.ones((n,), jnp.float32))
        self.consts_p = consts

        kernel = functools.partial(_generator_lts_kernel, n_valid=n)
        call = pl.pallas_call(
            kernel,
            out_shape=(
                jax.ShapeDtypeStruct((k, n_pad), jnp.float32),   # padded attrs, K rows
                jax.ShapeDtypeStruct((k, 1), jnp.float32),       # prob_sum per row
            ),
            in_specs=[
                pl.BlockSpec(memory_space=pltpu.MemorySpace.VMEM),  # consts slab
                pl.BlockSpec(memory_space=pltpu.MemorySpace.VMEM),  # eps
            ],
            out_specs=(
                pl.BlockSpec(memory_space=pltpu.MemorySpace.VMEM),
                pl.BlockSpec(memory_space=pltpu.MemorySpace.VMEM),
            ),
        )

        def _sample(consts, key):
            # eps generated on-device inside the jit; no per-call H2D transfer
            # beyond the (tiny, already-device) PRNG key.
            eps = jax.random.normal(key, (k, n_pad), dtype=jnp.float32)
            return call(consts, eps)

        self._sample = jax.jit(_sample)

    def sample_batch(self, key):
        """One pallas_call producing `batch` independent forward() draws.

        Returns (attrs_pad (K, n_pad), prob_sum (K, 1)); the consumer slices
        attrs_pad[k, :n] for step k.
        """
        return self._sample(self.consts_p, key)

    def forward(self, key):
        """Single-draw convenience wrapper (row 0 of a batched call)."""
        attrs_pad, prob_sum = self.sample_batch(key)
        return attrs_pad[0, : self.n], prob_sum[0]


if __name__ == "__main__":
    key = jax.random.PRNGKey(0)
    k_ctrl, k_attr, k_draw, k_draw2 = jax.random.split(key, 4)

    # Synthetic cam_info -> get_cam_attr(cam_info): N attributes, each with a
    # control range [min_i, max_i] and an initial attribute value inside it.
    N = 8
    mins = jnp.arange(N, dtype=jnp.float32) * 0.5
    maxs = mins + 1.0 + jax.random.uniform(k_ctrl, (N,)) * 4.0
    attribute_list = mins + (0.2 + 0.6 * jax.random.uniform(k_attr, (N,))) * (maxs - mins)

    K = 64
    gen = GeneratorLTS(mins, maxs, attribute_list, batch=K)

    attrs_pad, prob_sum = gen.sample_batch(k_draw)
    attrs_pad = jax.block_until_ready(attrs_pad)
    prob_sum = jax.block_until_ready(prob_sum)

    # --- exact reference (same key -> same eps outside the kernel) ----------
    N_PAD = gen.n_pad
    eps_ref = jax.random.normal(k_draw, (K, N_PAD), dtype=jnp.float32)
    rng = maxs - mins
    means_norm = (attribute_list - mins) / rng
    means_row = jnp.zeros((N_PAD,), jnp.float32).at[:N].set(means_norm)
    mins_row = jnp.zeros((N_PAD,), jnp.float32).at[:N].set(mins)
    rng_row = jnp.zeros((N_PAD,), jnp.float32).at[:N].set(rng)
    mask_row = jnp.zeros((N_PAD,), jnp.float32).at[:N].set(1.0)

    out_ref = means_row[None, :] + SIGMA * eps_ref
    attrs_ref = jnp.clip(out_ref, 0.0, 1.0) * rng_row[None, :] + mins_row[None, :]
    psum_ref = (-0.5 * jnp.sum((eps_ref * eps_ref) * mask_row[None, :], axis=1, keepdims=True)
                - N * LOG_CONST)

    assert attrs_pad.shape == (K, N_PAD) and prob_sum.shape == (K, 1)
    assert jnp.allclose(attrs_pad, attrs_ref, atol=1e-5, rtol=1e-5), "attrs mismatch"
    assert jnp.allclose(prob_sum, psum_ref, atol=1e-3, rtol=1e-5), "prob_sum mismatch"

    # attributes stay inside their control ranges; padded lanes are exactly 0
    attrs = attrs_pad[:, :N]
    assert bool(jnp.all(attrs >= mins[None, :] - 1e-4)), "attr below min"
    assert bool(jnp.all(attrs <= maxs[None, :] + 1e-4)), "attr above max"
    assert bool(jnp.all(attrs_pad[:, N:] == 0.0)), "padding lanes must be zero"

    # determinism: same key reproduces the draw; a different key changes it
    attrs_pad2, prob_sum2 = gen.sample_batch(k_draw)
    attrs_pad2 = jax.block_until_ready(attrs_pad2)
    assert bool(jnp.all(attrs_pad2 == attrs_pad)), "same key must reproduce draws"
    assert bool(jnp.all(prob_sum2 == prob_sum)), "same key must reproduce prob_sum"
    attrs_pad3, _ = gen.sample_batch(k_draw2)
    attrs_pad3 = jax.block_until_ready(attrs_pad3)
    assert not bool(jnp.all(attrs_pad3 == attrs_pad)), "different key should change draws"

    # single-draw convenience path
    a0, p0 = gen.forward(k_draw)
    a0 = jax.block_until_ready(a0)
    assert a0.shape == (N,) and p0.shape == (1,)
    assert bool(jnp.all(a0 == attrs[0]))

    print("KERNEL_OK")
</pallas_src>

<mosaic_0001>
module attributes {stable_mosaic.version = 11 : i64} {
  func.func @_generator_lts_kernel(%arg0: memref<8x128xf32, #tpu.memory_space<vmem>>, %arg1: memref<64x128xf32, #tpu.memory_space<vmem>>, %arg2: memref<64x128xf32, #tpu.memory_space<vmem>>, %arg3: memref<64x1xf32, #tpu.memory_space<vmem>>) attributes {dimension_semantics = [], scalar_prefetch = 0 : i64, scratch_operands = 0 : i64, tpu.core_type = #tpu.core_type<tc>} {
    %c0 = arith.constant 0 : index
    %c0_0 = arith.constant 0 : index
    %0 = vector.load %arg0[%c0, %c0_0] : memref<8x128xf32, #tpu.memory_space<vmem>>, vector<1x128xf32>
    %c1 = arith.constant 1 : index
    %c0_1 = arith.constant 0 : index
    %1 = vector.load %arg0[%c1, %c0_1] : memref<8x128xf32, #tpu.memory_space<vmem>>, vector<1x128xf32>
    %c2 = arith.constant 2 : index
    %c0_2 = arith.constant 0 : index
    %2 = vector.load %arg0[%c2, %c0_2] : memref<8x128xf32, #tpu.memory_space<vmem>>, vector<1x128xf32>
    %c3 = arith.constant 3 : index
    %c0_3 = arith.constant 0 : index
    %3 = vector.load %arg0[%c3, %c0_3] : memref<8x128xf32, #tpu.memory_space<vmem>>, vector<1x128xf32>
    %c0_4 = arith.constant 0 : index
    %c0_5 = arith.constant 0 : index
    %4 = vector.load %arg1[%c0_4, %c0_5] : memref<64x128xf32, #tpu.memory_space<vmem>>, vector<64x128xf32>
    %cst = arith.constant 2.000000e-02 : f32
    %5 = vector.broadcast %cst : f32 to vector<64x128xf32>
    %6 = arith.mulf %5, %4 : vector<64x128xf32>
    %7 = vector.broadcast %2 : vector<1x128xf32> to vector<64x128xf32>
    %8 = arith.addf %7, %6 : vector<64x128xf32>
    %cst_6 = arith.constant 0.000000e+00 : f32
    %cst_7 = arith.constant 1.000000e+00 : f32
    %9 = vector.broadcast %cst_6 : f32 to vector<64x128xf32>
    %10 = arith.maximumf %9, %8 : vector<64x128xf32>
    %11 = vector.broadcast %cst_7 : f32 to vector<64x128xf32>
    %12 = arith.minimumf %11, %10 : vector<64x128xf32>
    %13 = vector.broadcast %1 : vector<1x128xf32> to vector<64x128xf32>
    %14 = arith.mulf %12, %13 : vector<64x128xf32>
    %15 = vector.broadcast %0 : vector<1x128xf32> to vector<64x128xf32>
    %16 = arith.addf %14, %15 : vector<64x128xf32>
    %c0_8 = arith.constant 0 : index
    %c0_9 = arith.constant 0 : index
    %17 = vector.load %arg2[%c0_8, %c0_9] : memref<64x128xf32, #tpu.memory_space<vmem>>, vector<64x128xf32>
    tpu.vector_store %arg2[%c0_8, %c0_9], %16 {strides = array<i32>} : memref<64x128xf32, #tpu.memory_space<vmem>>, vector<64x128xf32>,
    %18 = arith.mulf %4, %4 : vector<64x128xf32>
    %19 = vector.broadcast %3 : vector<1x128xf32> to vector<64x128xf32>
    %20 = arith.mulf %18, %19 : vector<64x128xf32>
    %cst_10 = arith.constant dense<0.000000e+00> : vector<64xf32>
    %21 = vector.multi_reduction <add>, %20, %cst_10 [1] : vector<64x128xf32> to vector<64xf32>
    %22 = vector.shape_cast %21 : vector<64xf32> to vector<64x1xf32>
    %cst_11 = arith.constant -5.000000e-01 : f32
    %23 = vector.broadcast %cst_11 : f32 to vector<64x1xf32>
    %24 = arith.mulf %23, %22 : vector<64x1xf32>
    %cst_12 = arith.constant -23.9446754 : f32
    %25 = vector.broadcast %cst_12 : f32 to vector<64x1xf32>
    %26 = arith.subf %24, %25 : vector<64x1xf32>
    %c0_13 = arith.constant 0 : index
    %c0_14 = arith.constant 0 : index
    %27 = vector.load %arg3[%c0_13, %c0_14] : memref<64x1xf32, #tpu.memory_space<vmem>>, vector<64x1xf32>
    tpu.vector_store %arg3[%c0_13, %c0_14], %26 {strides = array<i32>} : memref<64x1xf32, #tpu.memory_space<vmem>>, vector<64x1xf32>,
    return
  }
}

</mosaic_0001>

<llo_original>
// kernel: _sample.1
$region0: #{_sample.1}
  #allocation0 [shape = 'u32[]', space=smem, size = 0x4, offset = 0x4, fixed_abs, tag = 'smem constant byte address 0x4 - core index']
  #allocation1 [shape = 'u32[144,128]{1,0:T(1,128)}', space=vmem, size = 0x12000, scoped, tag = 'internal scratch']
  %s0 = inlined_call_operand.vmem [shape: f32[8,128], index: 0, kind: input, shape index: {}]
  %s1 = inlined_call_operand.vmem [shape: f32[64,128], index: 1, kind: input, shape index: {}]
  %s2 = inlined_call_operand.hbm [shape: f32[64,128], index: 2, kind: output, shape index: {0}]
  %s3 = inlined_call_operand.vmem [shape: f32[64,1], index: 3, kind: output, shape index: {1}]
  %4 = xla_tuple %s2, %s3
  %s5 = sld [smem:[#allocation0]]
  $region26: #{_sample.1} parent=0
    _
  %s7 = ssub.s32 1, %s5
  %s8 = scalar_select 0, %s7, %s5
  $region1: #{_sample.1} parent=0
    #allocation2 [shape = 'u8[32768]{0}', space=vmem, size = 0x8000, scoped, tag = 'output window, operand 0, single buffered']
    #allocation3 [shape = 's32[1]{0}', space=sflag, size = 0x4, scoped, tag = 'scoped memory for _sample.1']
    %9 = vsyncpa [#allocation3], 0
    // Predicated region
    $region2: #{_sample.1} parent=1 // pred_check
      _
    $region3: #{_sample.1} parent=1 // pred_check_branch
      %11 = sbr.rel (0) target = $region5
    $region4: #{_sample.1} parent=1 // pred_region
      _
    $region5: #{_sample.1} parent=1 // pred_fallthru
      _
    // Predicated region
    $region6: #{_sample.1} parent=1 // pred_check
      _
    $region7: #{_sample.1} parent=1 // pred_check_branch
      %13 = sbr.rel (0) target = $region9
    $region8: #{_sample.1} parent=1 // pred_region
      _
    $region9: #{_sample.1} parent=1 // pred_fallthru
      _
    %v14 = vld [vmem:[%s0] sm:$0x1]
    %v15 = vld [vmem:[%s0 + $0x1] sm:$0x1]
    %v16 = vld [vmem:[%s0 + $0x2] sm:$0x1]
    %v17 = vld [vmem:[%s0 + $0x3] sm:$0x1]
    %v18 = vld [vmem:[%s1] sm:$0xff]
    %v19 = vld [vmem:[%s1 + $0x8] sm:$0xff]
    %v20 = vld [vmem:[%s1 + $0x10] sm:$0xff]
    %v21 = vld [vmem:[%s1 + $0x18] sm:$0xff]
    %v22 = vld [vmem:[%s1 + $0x20] sm:$0xff]
    %v23 = vld [vmem:[%s1 + $0x28] sm:$0xff]
    %v24 = vld [vmem:[%s1 + $0x30] sm:$0xff]
    %v25 = vld [vmem:[%s1 + $0x38] sm:$0xff]
    %v26 = vmul.f32 %v18, 0.02
    %v27 = vmul.f32 %v19, 0.02
    %v28 = vmul.f32 %v20, 0.02
    %v29 = vmul.f32 %v21, 0.02
    %v30 = vmul.f32 %v22, 0.02
    %v31 = vmul.f32 %v23, 0.02
    %v32 = vmul.f32 %v24, 0.02
    %v33 = vmul.f32 %v25, 0.02
    %v34 = vlaneseq
    %v35 = vshrl.u32 %v34, 7
    %v36 = vsub.s32 0, %v35
    %v37 = vrot.slane %v16, %v36
    %v38 = vadd.f32 %v37, %v26
    %v39 = vadd.f32 %v37, %v27
    %v40 = vadd.f32 %v37, %v28
    %v41 = vadd.f32 %v37, %v29
    %v42 = vadd.f32 %v37, %v30
    %v43 = vadd.f32 %v37, %v31
    %v44 = vadd.f32 %v37, %v32
    %v45 = vadd.f32 %v37, %v33
    %v46 = vmax.f32 %v38, 0.0
    %v47 = vmax.f32 %v39, 0.0
    %v48 = vmax.f32 %v40, 0.0
    %v49 = vmax.f32 %v41, 0.0
    %v50 = vmax.f32 %v42, 0.0
    %v51 = vmax.f32 %v43, 0.0
    %v52 = vmax.f32 %v44, 0.0
    %v53 = vmax.f32 %v45, 0.0
    %v54 = vmin.f32 %v46, 1.0
    %v55 = vmin.f32 %v47, 1.0
    %v56 = vmin.f32 %v48, 1.0
    %v57 = vmin.f32 %v49, 1.0
    %v58 = vmin.f32 %v50, 1.0
    %v59 = vmin.f32 %v51, 1.0
    %v60 = vmin.f32 %v52, 1.0
    %v61 = vmin.f32 %v53, 1.0
    %v62 = vlaneseq
    %v63 = vshrl.u32 %v62, 7
    %v64 = vsub.s32 0, %v63
    %v65 = vrot.slane %v15, %v64
    %v66 = vmul.f32 %v54, %v65
    %v67 = vmul.f32 %v55, %v65
    %v68 = vmul.f32 %v56, %v65
    %v69 = vmul.f32 %v57, %v65
    %v70 = vmul.f32 %v58, %v65
    %v71 = vmul.f32 %v59, %v65
    %v72 = vmul.f32 %v60, %v65
    %v73 = vmul.f32 %v61, %v65
    %v74 = vlaneseq
    %v75 = vshrl.u32 %v74, 7
    %v76 = vsub.s32 0, %v75
    %v77 = vrot.slane %v14, %v76
    %v78 = vadd.f32 %v66, %v77
    %v79 = vadd.f32 %v67, %v77
    %v80 = vadd.f32 %v68, %v77
    %v81 = vadd.f32 %v69, %v77
    %v82 = vadd.f32 %v70, %v77
    %v83 = vadd.f32 %v71, %v77
    %v84 = vadd.f32 %v72, %v77
    %v85 = vadd.f32 %v73, %v77
    %86 = vst [vmem:[#allocation2] sm:$0xff] %v78
    %87 = vst [vmem:[#allocation2 + $0x8] sm:$0xff] %v79
    %88 = vst [vmem:[#allocation2 + $0x10] sm:$0xff] %v80
    %89 = vst [vmem:[#allocation2 + $0x18] sm:$0xff] %v81
    %90 = vst [vmem:[#allocation2 + $0x20] sm:$0xff] %v82
    %91 = vst [vmem:[#allocation2 + $0x28] sm:$0xff] %v83
    %92 = vst [vmem:[#allocation2 + $0x30] sm:$0xff] %v84
    %93 = vst [vmem:[#allocation2 + $0x38] sm:$0xff] %v85
    %v94 = vmul.f32 %v18, %v18
    %v95 = vmul.f32 %v19, %v19
    %v96 = vmul.f32 %v20, %v20
    %v97 = vmul.f32 %v21, %v21
    %v98 = vmul.f32 %v22, %v22
    %v99 = vmul.f32 %v23, %v23
    %v100 = vmul.f32 %v24, %v24
    %v101 = vmul.f32 %v25, %v25
    %v102 = vlaneseq
    %v103 = vshrl.u32 %v102, 7
    %v104 = vsub.s32 0, %v103
    %v105 = vrot.slane %v17, %v104
    %v106 = vmul.f32 %v94, %v105
    %v107 = vmul.f32 %v95, %v105
    %v108 = vmul.f32 %v96, %v105
    %v109 = vmul.f32 %v97, %v105
    %v110 = vmul.f32 %v98, %v105
    %v111 = vmul.f32 %v99, %v105
    %v112 = vmul.f32 %v100, %v105
    %v113 = vmul.f32 %v101, %v105
    %114 = vadd.xlane.f32.xlu0 %v106
    %v115 = vpop.xlane.xlu0 %114
    %116 = vadd.xlane.f32.xlu0 %v107
    %v117 = vpop.xlane.xlu0 %116
    %118 = vadd.xlane.f32.xlu0 %v108
    %v119 = vpop.xlane.xlu0 %118
    %120 = vadd.xlane.f32.xlu0 %v109
    %v121 = vpop.xlane.xlu0 %120
    %122 = vadd.xlane.f32.xlu0 %v110
    %v123 = vpop.xlane.xlu0 %122
    %124 = vadd.xlane.f32.xlu0 %v111
    %v125 = vpop.xlane.xlu0 %124
    %126 = vadd.xlane.f32.xlu0 %v112
    %v127 = vpop.xlane.xlu0 %126
    %128 = vadd.xlane.f32.xlu0 %v113
    %v129 = vpop.xlane.xlu0 %128
    %v130 = vmul.f32 %v115, -0.5
    %v131 = vmul.f32 %v117, -0.5
    %v132 = vmul.f32 %v119, -0.5
    %v133 = vmul.f32 %v121, -0.5
    %v134 = vmul.f32 %v123, -0.5
    %v135 = vmul.f32 %v125, -0.5
    %v136 = vmul.f32 %v127, -0.5
    %v137 = vmul.f32 %v129, -0.5
    %v138 = vsub.f32 %v130, -23.944675
    %v139 = vsub.f32 %v131, -23.944675
    %v140 = vsub.f32 %v132, -23.944675
    %v141 = vsub.f32 %v133, -23.944675
    %v142 = vsub.f32 %v134, -23.944675
    %v143 = vsub.f32 %v135, -23.944675
    %v144 = vsub.f32 %v136, -23.944675
    %v145 = vsub.f32 %v137, -23.944675
    %vm146 = vcmask 7168
    %147 = vst.msk [vmem:[%s3] sm:$0xff] %vm146, %v138
    %148 = vst.msk [vmem:[%s3 + $0x8] sm:$0xff] %vm146, %v139
    %149 = vst.msk [vmem:[%s3 + $0x10] sm:$0xff] %vm146, %v140
    %150 = vst.msk [vmem:[%s3 + $0x18] sm:$0xff] %vm146, %v141
    %151 = vst.msk [vmem:[%s3 + $0x20] sm:$0xff] %vm146, %v142
    %152 = vst.msk [vmem:[%s3 + $0x28] sm:$0xff] %vm146, %v143
    %153 = vst.msk [vmem:[%s3 + $0x30] sm:$0xff] %vm146, %v144
    %154 = vst.msk [vmem:[%s3 + $0x38] sm:$0xff] %vm146, %v145
    // Predicated region
    $region10: #{_sample.1} parent=1 // pred_check
      _
    $region11: #{_sample.1} parent=1 // pred_check_branch
      %156 = sbr.rel (0) target = $region13
    $region12: #{_sample.1} parent=1 // pred_region
      %s158 = ssub.s32 1024, 1024
      %159 = vsyncadd [#allocation3], %s158
      %s160 = sshll.u32 [#allocation2], 4
      %s161 = int_to_ptr.vmem [resolvable:$true] %s160
      %166 = dma.vmem_to_hbm [thread:$0]  %s161, 1024, %s2, [#allocation3], 128, 128, 8
    $region13: #{_sample.1} parent=1 // pred_fallthru
      _
    // Predicated region
    $region14: #{_sample.1} parent=1 // pred_check
      _
    $region15: #{_sample.1} parent=1 // pred_check_branch
      %168 = sbr.rel (0) target = $region17
    $region16: #{_sample.1} parent=1 // pred_region
      _
    $region17: #{_sample.1} parent=1 // pred_fallthru
      _
    // Predicated region
    $region18: #{_sample.1} parent=1 // pred_check
      _
    $region19: #{_sample.1} parent=1 // pred_check_branch
      %170 = sbr.rel (0) target = $region21
    $region20: #{_sample.1} parent=1 // pred_region
      %171 = dma.done [#allocation3], 1024
    $region21: #{_sample.1} parent=1 // pred_fallthru
      _
    // Predicated region
    $region22: #{_sample.1} parent=1 // pred_check
      _
    $region23: #{_sample.1} parent=1 // pred_check_branch
      %173 = sbr.rel (0) target = $region25
    $region24: #{_sample.1} parent=1 // pred_region
      _
    $region25: #{_sample.1} parent=1 // pred_fallthru
      _
    %174 = vsyncpa [#allocation3], 1

</llo_original>
